<compile_context>
chip_gen: v7x
topology: tpu7x:2x2x1
jax: 0.10.0
libtpu: 0.0.40
codegen_flags: <defaults>
</compile_context>

<pallas_src>
import functools

import numpy as np
import jax
import jax.numpy as jnp
from jax.experimental import pallas as pl
from jax.experimental.pallas import tpu as pltpu


_OUT_LANES = 128          # lane-dense output row (10 lanes used, rest zero)
_TILE_BUDGET = 24 * 1024 * 1024   # bytes of double-buffered input blocks per step
_VMEM_LIMIT = 48 * 1024 * 1024    # safe on v5e/v6e (128 MiB) and v7x (64 MiB)
_MAX_TILE_ROWS = 2048


def _static_pow(x, p):
    """x**p for a static exponent; small integer p lowers to pure VPU multiplies."""
    if isinstance(p, int) and 1 <= p <= 12:
        out = x
        for _ in range(p - 1):
            out = out * x
        return out
    # TODO(synk): non-integer / non-positive gamma falls back to generic pow;
    # gamma <= 0 with hard binary labels (t*(1-t)==0) would produce inf/nan.
    return x ** p


# ----------------------------------------------------------------------------
# Fused kernel: one (8, 128) block of partial sums per batch tile.
#   lane 0..2 : sum bce*w for start / middle / end classes
#   lane 3    : sum (diff sigmoid(pred_end))^2        (label temporal smoothing)
#   lane 4    : sum valid * max(margin + neg_s - pos_s, 0)   (saliency hinge)
#   lane 5    : sum valid * pos_s^2
#   lane 6    : sum valid * neg_s^2
#   lane 7    : sum valid                              (count of valid rows)
#   lane 8    : sum (diff scores)^2                    (saliency smoothing)
#   lane 9    : sum (diff sigmoid(scores))^2           (temporal consistency)
#   lanes 10+ and sublanes 1..7: zero
# ----------------------------------------------------------------------------
def _fused_loss_kernel(fp_ref, t0_ref, t1_ref, t2_ref, sc_ref, idx_ref, out_ref,
                       *, gamma, margin):
    vals = []

    # ---- frame label losses (start / middle / end) ----
    pp = None
    for c, t_ref in enumerate((t0_ref, t1_ref, t2_ref)):
        t = t_ref[...].astype(jnp.float32)
        logits = fp_ref[c].astype(jnp.float32)
        # Faithful to the torch reference: BCE-with-logits is applied to the
        # *probability* pred = sigmoid(logits) (double sigmoid).  pred > 0, so
        # max(pred, 0) == pred and |pred| == pred; the stable BCE simplifies to
        #   pred * (1 - t) + log1p(exp(-pred)).
        pred = jax.nn.sigmoid(logits)
        e = jnp.exp(-pred)
        bce = pred * (1.0 - t) + jnp.log1p(e)
        w = _static_pow(t * (1.0 - t), gamma)
        vals.append(jnp.sum(bce * w))
        if c == 2:
            # sigmoid(pred_end) reusing the exp already computed for the BCE.
            pp = 1.0 / (1.0 + e)

    # Temporal smoothing on sigmoid(pred_end) (double sigmoid, as in torch).
    if pp.shape[-1] > 1:
        dpp = pp[:, 1:] - pp[:, :-1]
        vals.append(jnp.sum(dpp * dpp))
    else:
        vals.append(jnp.float32(0.0))

    # ---- saliency losses ----
    scores = sc_ref[...].astype(jnp.float32)          # [bb, L]
    bb, L = scores.shape
    idx = idx_ref[...]                                # [bb, 3] int32 (pos, neg, start)
    pos, neg, start = idx[:, 0:1], idx[:, 1:2], idx[:, 2:3]
    pos_l = pos - start
    neg_l = neg - start
    valid = ((pos != -1) & (neg != -1)
             & (pos_l >= 0) & (pos_l < L)
             & (neg_l >= 0) & (neg_l < L))
    vf = valid.astype(jnp.float32)                    # [bb, 1]

    # One-hot gather: invalid rows have pos_l/neg_l outside [0, L) so the
    # equality never matches; vf additionally zeroes their contributions.
    col = jax.lax.broadcasted_iota(jnp.int32, (bb, L), 1)
    pos_s = jnp.sum(jnp.where(col == pos_l, scores, 0.0), axis=-1, keepdims=True)
    neg_s = jnp.sum(jnp.where(col == neg_l, scores, 0.0), axis=-1, keepdims=True)

    vals.append(jnp.sum(vf * jnp.maximum(margin + neg_s - pos_s, 0.0)))  # hinge
    vals.append(jnp.sum(vf * pos_s * pos_s))
    vals.append(jnp.sum(vf * neg_s * neg_s))
    vals.append(jnp.sum(vf))                                             # valid count

    if L > 1:
        ds = scores[:, 1:] - scores[:, :-1]
        vals.append(jnp.sum(ds * ds))
        sp = jax.nn.sigmoid(scores)
        dsp = sp[:, 1:] - sp[:, :-1]
        vals.append(jnp.sum(dsp * dsp))
    else:
        vals.append(jnp.float32(0.0))
        vals.append(jnp.float32(0.0))

    # ---- assemble one lane-dense (8, 128) output block per tile ----
    row = jax.lax.broadcasted_iota(jnp.int32, (8, _OUT_LANES), 0)
    lane = jax.lax.broadcasted_iota(jnp.int32, (8, _OUT_LANES), 1)
    row0 = row == 0
    acc = jnp.zeros((8, _OUT_LANES), jnp.float32)
    for k, v in enumerate(vals):
        acc = acc + jnp.where(row0 & (lane == k), v, 0.0)
    out_ref[...] = acc


def _choose_tiling(b, row_bytes):
    """Pick (num_tiles, rows_per_tile, padded_batch) from a VMEM budget.

    Rows per tile is a multiple of 8 (sublane rule), capped by the budget for
    double-buffered input blocks; the grid has >= 2 steps whenever the padded
    batch allows it so v7x can shard the 'parallel' axis across both TCs.
    """
    bb_cap = (_TILE_BUDGET // (2 * row_bytes)) // 8 * 8
    bb_cap = max(8, min(_MAX_TILE_ROWS, bb_cap))
    b_pad0 = -(-b // 8) * 8
    if b_pad0 <= 8:
        return 1, b_pad0, b_pad0
    num_tiles = max(2, -(-b_pad0 // bb_cap))
    bb = -(-(-(-b_pad0 // num_tiles)) // 8) * 8
    return num_tiles, bb, bb * num_tiles


# ----------------------------------------------------------------------------
# Wrapper: single pallas_call gridded over batch tiles, then scalar finish.
# ----------------------------------------------------------------------------
def _fused_losses(frame_pred, start_lbl, mid_lbl, end_lbl,
                  scores, pos_idx, neg_idx, starts, *, gamma, margin):
    B, T, _ = frame_pred.shape
    L = scores.shape[-1]

    # One (3, B, T) logits tensor (single transpose) instead of 3 strided slices.
    fp3 = jnp.moveaxis(frame_pred[:, :, :3], 2, 0)

    # Pack (pos, neg, start) into one [B, 3] int32 array (single small DMA).
    pos_idx = pos_idx.astype(jnp.int32).reshape(-1)[:B]
    neg_idx = neg_idx.astype(jnp.int32).reshape(-1)[:B]
    starts = starts.astype(jnp.int32).reshape(-1)
    ns = starts.shape[0]
    if ns < B:
        # torch reference skips rows i >= len(short_memory_starts): mark invalid.
        rows = jnp.arange(B, dtype=jnp.int32)
        pos_idx = jnp.where(rows < ns, pos_idx, -1)
        neg_idx = jnp.where(rows < ns, neg_idx, -1)
        starts = jnp.concatenate([starts, jnp.zeros((B - ns,), jnp.int32)])
    else:
        starts = starts[:B]
    idx = jnp.stack([pos_idx, neg_idx, starts], axis=1)          # (B, 3)

    # VMEM-budgeted batch tiling.
    row_bytes = (3 * T * fp3.dtype.itemsize
                 + T * (start_lbl.dtype.itemsize + mid_lbl.dtype.itemsize
                        + end_lbl.dtype.itemsize)
                 + L * scores.dtype.itemsize + 3 * 4)
    num_tiles, bb, b_pad = _choose_tiling(B, row_bytes)

    if b_pad != B:
        pad = b_pad - B
        fp3 = jnp.pad(fp3, ((0, 0), (0, pad), (0, 0)))
        start_lbl = jnp.pad(start_lbl, ((0, pad), (0, 0)))
        mid_lbl = jnp.pad(mid_lbl, ((0, pad), (0, 0)))
        end_lbl = jnp.pad(end_lbl, ((0, pad), (0, 0)))
        scores = jnp.pad(scores, ((0, pad), (0, 0)))
        idx = jnp.pad(idx, ((0, pad), (0, 0)), constant_values=-1)

    frame_spec = pl.BlockSpec((bb, T), lambda i: (i, 0))
    partial = pl.pallas_call(
        functools.partial(_fused_loss_kernel, gamma=gamma, margin=float(margin)),
        out_shape=jax.ShapeDtypeStruct((num_tiles * 8, _OUT_LANES), jnp.float32),
        grid=(num_tiles,),
        in_specs=[
            pl.BlockSpec((3, bb, T), lambda i: (0, i, 0)),
            frame_spec, frame_spec, frame_spec,
            pl.BlockSpec((bb, L), lambda i: (i, 0)),
            pl.BlockSpec((bb, 3), lambda i: (i, 0)),
        ],
        out_specs=pl.BlockSpec((8, _OUT_LANES), lambda i: (i, 0)),
        compiler_params=pltpu.CompilerParams(
            dimension_semantics=("parallel",),
            vmem_limit_bytes=_VMEM_LIMIT),
    )(fp3, start_lbl, mid_lbl, end_lbl, scores, idx)

    # Only row 0 of each tile block is non-zero; summing everything is exact.
    return jnp.sum(partial, axis=0)                  # (128,) global partial sums


def set_criterion_ol_forward(outputs, targets, *, weight_dict, losses,
                             saliency_margin=1.0, use_consistency_loss=True,
                             gamma=3):
    # TODO(synk): the torch code's missing-key early-return ("infolacked", loss 0)
    # is not replicated; all required outputs/targets are assumed present.
    frame_pred = outputs['frame_pred']
    scores = outputs['saliency_scores']
    B, T, _ = frame_pred.shape
    L = scores.shape[-1]

    sums = _fused_losses(
        frame_pred,
        targets['start_label'], targets['middle_label'], targets['end_label'],
        scores,
        targets['saliency_pos_labels'], targets['saliency_neg_labels'],
        targets['short_memory_start']['spans'],
        gamma=gamma, margin=saliency_margin)

    loss_dict = {}
    inv_bt = 1.0 / float(B * T)
    inv_bt1 = 1.0 / float(max(B * (T - 1), 1))
    inv_bl1 = 1.0 / float(max(B * (L - 1), 1))

    if 'labels' in losses:
        l_start = sums[0] * inv_bt
        l_mid = sums[1] * inv_bt
        l_end = sums[2] * inv_bt
        loss_dict['loss_start_label'] = l_start
        loss_dict['loss_middle_label'] = l_mid
        loss_dict['loss_end_label'] = l_end
        if use_consistency_loss:
            smooth = sums[3] * inv_bt1
            loss_dict['loss_label'] = (l_start + l_mid + l_end) / 3.0 + 0.1 * smooth

    if 'saliency' in losses:
        count = sums[7]
        safe = jnp.maximum(count, 1.0)
        sal = sums[4] / safe + 0.01 * (sums[5] / safe + sums[6] / safe)
        if use_consistency_loss:
            sal = sal + 0.1 * sums[8] * inv_bl1
        loss_dict['loss_saliency'] = jnp.where(count > 0.0, sal, 0.0)

    if 'temporal_consistency' in losses:
        loss_dict['loss_temporal_consistency'] = sums[9] * inv_bl1

    total_loss = sum(loss_dict[k] * weight_dict.get(k, 1.0) for k in loss_dict)
    return total_loss, loss_dict


# ----------------------------------------------------------------------------
# Pure numpy reference (mirrors the torch code) for a sanity check
# ----------------------------------------------------------------------------
def _reference(outputs, targets, weight_dict, margin, gamma):
    def sig(x):
        return 1.0 / (1.0 + np.exp(-x))

    fp = np.asarray(outputs['frame_pred'], dtype=np.float32)
    losses = {}
    total = 0.0
    names = ['start_label', 'middle_label', 'end_label']
    pred = None
    for i, n in enumerate(names):
        t = np.asarray(targets[n], dtype=np.float32)
        pred = sig(fp)[:, :, i]
        bce = np.maximum(pred, 0) - pred * t + np.log1p(np.exp(-np.abs(pred)))
        w = (t * (1 - t)) ** gamma
        li = float(np.mean(bce * w))
        losses['loss_' + n] = li
        total += li
    pp = sig(pred)
    smooth = float(np.mean((pp[:, 1:] - pp[:, :-1]) ** 2))
    losses['loss_label'] = total / 3.0 + 0.1 * smooth

    s = np.asarray(outputs['saliency_scores'], dtype=np.float32)
    pos = np.asarray(targets['saliency_pos_labels'])
    neg = np.asarray(targets['saliency_neg_labels'])
    st = np.asarray(targets['short_memory_start']['spans'])
    vp, vn = [], []
    for i in range(len(pos)):
        if i >= len(st):
            continue
        if pos[i] == -1 or neg[i] == -1:
            continue
        p_loc = int(pos[i] - st[i])
        n_loc = int(neg[i] - st[i])
        if 0 <= p_loc < s.shape[1] and 0 <= n_loc < s.shape[1]:
            vp.append(s[i, p_loc])
            vn.append(s[i, n_loc])
    if not vp:
        losses['loss_saliency'] = 0.0
    else:
        vp = np.array(vp); vn = np.array(vn)
        base = float(np.maximum(margin + vn - vp, 0).mean())
        l2 = 0.01 * (float((vp ** 2).mean()) + float((vn ** 2).mean()))
        sm2 = 0.1 * float(np.mean((s[:, 1:] - s[:, :-1]) ** 2))
        losses['loss_saliency'] = base + l2 + sm2
    sp = sig(s)
    losses['loss_temporal_consistency'] = float(np.mean((sp[:, 1:] - sp[:, :-1]) ** 2))
    tot = sum(losses[k] * weight_dict.get(k, 1.0) for k in losses)
    return tot, losses


if __name__ == "__main__":
    key = jax.random.PRNGKey(0)
    B, T, C, L = 2, 8, 4, 8
    k1, k2, k3, k4, k5 = jax.random.split(key, 5)

    frame_pred = jax.random.normal(k1, (B, T, C), jnp.float32)
    # soft frame labels in [0,1] (binary targets would zero the focal-style weight)
    start_label = jax.random.uniform(k2, (B, T), jnp.float32)
    middle_label = jax.random.uniform(k3, (B, T), jnp.float32)
    end_label = jax.random.uniform(k4, (B, T), jnp.float32)
    saliency_scores = jax.random.normal(k5, (B, L), jnp.float32)

    short_memory_start = jnp.array([0, 2], jnp.int32)     # per-sample window start
    saliency_pos = jnp.array([3, 5], jnp.int32)           # global indices
    saliency_neg = jnp.array([6, -1], jnp.int32)          # second sample invalid

    outputs = {'frame_pred': frame_pred, 'saliency_scores': saliency_scores}
    targets = {'start_label': start_label,
               'middle_label': middle_label,
               'end_label': end_label,
               'saliency_pos_labels': saliency_pos,
               'saliency_neg_labels': saliency_neg,
               'short_memory_start': {'spans': short_memory_start}}

    weight_dict = {'loss_label': 4.0, 'loss_saliency': 1.0,
                   'loss_temporal_consistency': 1.0,
                   'loss_start_label': 0.5, 'loss_middle_label': 0.5,
                   'loss_end_label': 0.5}
    losses = ('labels', 'saliency', 'temporal_consistency')

    total, loss_dict = set_criterion_ol_forward(
        outputs, targets, weight_dict=weight_dict, losses=losses,
        saliency_margin=1.0, use_consistency_loss=True, gamma=3)
    total = jax.block_until_ready(total)

    ref_total, ref_losses = _reference(outputs, targets, weight_dict,
                                       margin=1.0, gamma=3)
    assert np.allclose(float(total), ref_total, rtol=1e-4, atol=1e-5), \
        (float(total), ref_total)
    for k in loss_dict:
        assert np.allclose(float(loss_dict[k]), ref_losses[k], rtol=1e-4, atol=1e-5), \
            (k, float(loss_dict[k]), ref_losses[k])

    print("KERNEL_OK")
</pallas_src>

<mosaic_0001>
module attributes {stable_mosaic.version = 11 : i64} {
  func.func @_fused_loss_kernel(%arg0: i32, %arg1: memref<3x8x8xf32, #tpu.memory_space<vmem>>, %arg2: memref<8x8xf32, #tpu.memory_space<vmem>>, %arg3: memref<8x8xf32, #tpu.memory_space<vmem>>, %arg4: memref<8x8xf32, #tpu.memory_space<vmem>>, %arg5: memref<8x8xf32, #tpu.memory_space<vmem>>, %arg6: memref<8x3xi32, #tpu.memory_space<vmem>>, %arg7: memref<8x128xf32, #tpu.memory_space<vmem>>) attributes {dimension_semantics = [#tpu.dimension_semantics<parallel>], iteration_bounds = array<i64: 1>, scalar_prefetch = 0 : i64, scratch_operands = 0 : i64, tpu.core_type = #tpu.core_type<tc>, window_params = [{transform_indices = @transform_0, window_bounds = array<i64: 3, 8, 8>}, {transform_indices = @transform_1, window_bounds = array<i64: 8, 8>}, {transform_indices = @transform_2, window_bounds = array<i64: 8, 8>}, {transform_indices = @transform_3, window_bounds = array<i64: 8, 8>}, {transform_indices = @transform_4, window_bounds = array<i64: 8, 8>}, {transform_indices = @transform_5, window_bounds = array<i64: 8, 3>}, {transform_indices = @transform_6, window_bounds = array<i64: 8, 128>}]} {
    %c0 = arith.constant 0 : index
    %c0_0 = arith.constant 0 : index
    %0 = vector.load %arg2[%c0, %c0_0] : memref<8x8xf32, #tpu.memory_space<vmem>>, vector<8x8xf32>
    %c0_1 = arith.constant 0 : index
    %c0_2 = arith.constant 0 : index
    %c0_3 = arith.constant 0 : index
    %1 = vector.load %arg1[%c0_1, %c0_2, %c0_3] : memref<3x8x8xf32, #tpu.memory_space<vmem>>, vector<1x8x8xf32>
    %2 = vector.shape_cast %1 : vector<1x8x8xf32> to vector<8x8xf32>
    %3 = arith.negf %2 : vector<8x8xf32>
    %4 = math.exp %3 : vector<8x8xf32>
    %cst = arith.constant 1.000000e+00 : f32
    %5 = vector.broadcast %cst : f32 to vector<8x8xf32>
    %6 = arith.addf %5, %4 : vector<8x8xf32>
    %7 = arith.divf %5, %6 : vector<8x8xf32>
    %cst_4 = arith.constant 0.000000e+00 : f32
    %8 = vector.broadcast %cst_4 : f32 to vector<8x8xf32>
    %9 = arith.subf %8, %7 : vector<8x8xf32>
    %10 = math.exp %9 : vector<8x8xf32>
    %cst_5 = arith.constant 1.000000e+00 : f32
    %11 = vector.broadcast %cst_5 : f32 to vector<8x8xf32>
    %12 = arith.subf %11, %0 : vector<8x8xf32>
    %13 = arith.mulf %7, %12 : vector<8x8xf32>
    %14 = math.log1p %10 : vector<8x8xf32>
    %15 = arith.addf %13, %14 : vector<8x8xf32>
    %cst_6 = arith.constant 1.000000e+00 : f32
    %16 = vector.broadcast %cst_6 : f32 to vector<8x8xf32>
    %17 = arith.subf %16, %0 : vector<8x8xf32>
    %18 = arith.mulf %0, %17 : vector<8x8xf32>
    %19 = arith.mulf %18, %18 : vector<8x8xf32>
    %20 = arith.mulf %19, %18 : vector<8x8xf32>
    %21 = arith.mulf %15, %20 : vector<8x8xf32>
    %22 = vector.shape_cast %21 : vector<8x8xf32> to vector<1x8x8xf32>
    %cst_7 = arith.constant dense<0.000000e+00> : vector<1xf32>
    %23 = vector.multi_reduction <add>, %22, %cst_7 [1, 2] : vector<1x8x8xf32> to vector<1xf32>
    %24 = vector.shape_cast %23 : vector<1xf32> to vector<1x1x1xf32>
    %25 = vector.extract %24[0, 0, 0] : f32 from vector<1x1x1xf32>
    %c0_8 = arith.constant 0 : index
    %c0_9 = arith.constant 0 : index
    %26 = vector.load %arg3[%c0_8, %c0_9] : memref<8x8xf32, #tpu.memory_space<vmem>>, vector<8x8xf32>
    %c1 = arith.constant 1 : index
    %c0_10 = arith.constant 0 : index
    %c0_11 = arith.constant 0 : index
    %27 = vector.load %arg1[%c1, %c0_10, %c0_11] : memref<3x8x8xf32, #tpu.memory_space<vmem>>, vector<1x8x8xf32>
    %28 = vector.shape_cast %27 : vector<1x8x8xf32> to vector<8x8xf32>
    %29 = arith.negf %28 : vector<8x8xf32>
    %30 = math.exp %29 : vector<8x8xf32>
    %cst_12 = arith.constant 1.000000e+00 : f32
    %31 = vector.broadcast %cst_12 : f32 to vector<8x8xf32>
    %32 = arith.addf %31, %30 : vector<8x8xf32>
    %33 = arith.divf %31, %32 : vector<8x8xf32>
    %cst_13 = arith.constant 0.000000e+00 : f32
    %34 = vector.broadcast %cst_13 : f32 to vector<8x8xf32>
    %35 = arith.subf %34, %33 : vector<8x8xf32>
    %36 = math.exp %35 : vector<8x8xf32>
    %cst_14 = arith.constant 1.000000e+00 : f32
    %37 = vector.broadcast %cst_14 : f32 to vector<8x8xf32>
    %38 = arith.subf %37, %26 : vector<8x8xf32>
    %39 = arith.mulf %33, %38 : vector<8x8xf32>
    %40 = math.log1p %36 : vector<8x8xf32>
    %41 = arith.addf %39, %40 : vector<8x8xf32>
    %cst_15 = arith.constant 1.000000e+00 : f32
    %42 = vector.broadcast %cst_15 : f32 to vector<8x8xf32>
    %43 = arith.subf %42, %26 : vector<8x8xf32>
    %44 = arith.mulf %26, %43 : vector<8x8xf32>
    %45 = arith.mulf %44, %44 : vector<8x8xf32>
    %46 = arith.mulf %45, %44 : vector<8x8xf32>
    %47 = arith.mulf %41, %46 : vector<8x8xf32>
    %48 = vector.shape_cast %47 : vector<8x8xf32> to vector<1x8x8xf32>
    %cst_16 = arith.constant dense<0.000000e+00> : vector<1xf32>
    %49 = vector.multi_reduction <add>, %48, %cst_16 [1, 2] : vector<1x8x8xf32> to vector<1xf32>
    %50 = vector.shape_cast %49 : vector<1xf32> to vector<1x1x1xf32>
    %51 = vector.extract %50[0, 0, 0] : f32 from vector<1x1x1xf32>
    %c0_17 = arith.constant 0 : index
    %c0_18 = arith.constant 0 : index
    %52 = vector.load %arg4[%c0_17, %c0_18] : memref<8x8xf32, #tpu.memory_space<vmem>>, vector<8x8xf32>
    %c2 = arith.constant 2 : index
    %c0_19 = arith.constant 0 : index
    %c0_20 = arith.constant 0 : index
    %53 = vector.load %arg1[%c2, %c0_19, %c0_20] : memref<3x8x8xf32, #tpu.memory_space<vmem>>, vector<1x8x8xf32>
    %54 = vector.shape_cast %53 : vector<1x8x8xf32> to vector<8x8xf32>
    %55 = arith.negf %54 : vector<8x8xf32>
    %56 = math.exp %55 : vector<8x8xf32>
    %cst_21 = arith.constant 1.000000e+00 : f32
    %57 = vector.broadcast %cst_21 : f32 to vector<8x8xf32>
    %58 = arith.addf %57, %56 : vector<8x8xf32>
    %59 = arith.divf %57, %58 : vector<8x8xf32>
    %cst_22 = arith.constant 0.000000e+00 : f32
    %60 = vector.broadcast %cst_22 : f32 to vector<8x8xf32>
    %61 = arith.subf %60, %59 : vector<8x8xf32>
    %62 = math.exp %61 : vector<8x8xf32>
    %cst_23 = arith.constant 1.000000e+00 : f32
    %63 = vector.broadcast %cst_23 : f32 to vector<8x8xf32>
    %64 = arith.subf %63, %52 : vector<8x8xf32>
    %65 = arith.mulf %59, %64 : vector<8x8xf32>
    %66 = math.log1p %62 : vector<8x8xf32>
    %67 = arith.addf %65, %66 : vector<8x8xf32>
    %cst_24 = arith.constant 1.000000e+00 : f32
    %68 = vector.broadcast %cst_24 : f32 to vector<8x8xf32>
    %69 = arith.subf %68, %52 : vector<8x8xf32>
    %70 = arith.mulf %52, %69 : vector<8x8xf32>
    %71 = arith.mulf %70, %70 : vector<8x8xf32>
    %72 = arith.mulf %71, %70 : vector<8x8xf32>
    %73 = arith.mulf %67, %72 : vector<8x8xf32>
    %74 = vector.shape_cast %73 : vector<8x8xf32> to vector<1x8x8xf32>
    %cst_25 = arith.constant dense<0.000000e+00> : vector<1xf32>
    %75 = vector.multi_reduction <add>, %74, %cst_25 [1, 2] : vector<1x8x8xf32> to vector<1xf32>
    %76 = vector.shape_cast %75 : vector<1xf32> to vector<1x1x1xf32>
    %77 = vector.extract %76[0, 0, 0] : f32 from vector<1x1x1xf32>
    %cst_26 = arith.constant 1.000000e+00 : f32
    %78 = vector.broadcast %cst_26 : f32 to vector<8x8xf32>
    %79 = arith.addf %78, %62 : vector<8x8xf32>
    %cst_27 = arith.constant 1.000000e+00 : f32
    %80 = vector.broadcast %cst_27 : f32 to vector<8x8xf32>
    %81 = arith.divf %80, %79 : vector<8x8xf32>
    %82 = vector.extract_strided_slice %81 {offsets = [0, 1], sizes = [8, 7], strides = [1, 1]} : vector<8x8xf32> to vector<8x7xf32>
    %83 = vector.extract_strided_slice %81 {offsets = [0, 0], sizes = [8, 7], strides = [1, 1]} : vector<8x8xf32> to vector<8x7xf32>
    %84 = arith.subf %82, %83 : vector<8x7xf32>
    %85 = arith.mulf %84, %84 : vector<8x7xf32>
    %86 = vector.shape_cast %85 : vector<8x7xf32> to vector<1x8x7xf32>
    %cst_28 = arith.constant dense<0.000000e+00> : vector<1xf32>
    %87 = vector.multi_reduction <add>, %86, %cst_28 [1, 2] : vector<1x8x7xf32> to vector<1xf32>
    %88 = vector.shape_cast %87 : vector<1xf32> to vector<1x1x1xf32>
    %89 = vector.extract %88[0, 0, 0] : f32 from vector<1x1x1xf32>
    %c0_29 = arith.constant 0 : index
    %c0_30 = arith.constant 0 : index
    %90 = vector.load %arg5[%c0_29, %c0_30] : memref<8x8xf32, #tpu.memory_space<vmem>>, vector<8x8xf32>
    %c0_31 = arith.constant 0 : index
    %c0_32 = arith.constant 0 : index
    %91 = vector.load %arg6[%c0_31, %c0_32] : memref<8x3xi32, #tpu.memory_space<vmem>>, vector<8x3xi32>
    %92 = vector.extract_strided_slice %91 {offsets = [0, 0], sizes = [8, 1], strides = [1, 1]} : vector<8x3xi32> to vector<8x1xi32>
    %93 = vector.extract_strided_slice %91 {offsets = [0, 1], sizes = [8, 1], strides = [1, 1]} : vector<8x3xi32> to vector<8x1xi32>
    %94 = vector.extract_strided_slice %91 {offsets = [0, 2], sizes = [8, 1], strides = [1, 1]} : vector<8x3xi32> to vector<8x1xi32>
    %95 = arith.subi %92, %94 : vector<8x1xi32>
    %96 = arith.subi %93, %94 : vector<8x1xi32>
    %c-1_i32 = arith.constant -1 : i32
    %97 = vector.broadcast %c-1_i32 : i32 to vector<8x1xi32>
    %98 = arith.cmpi ne, %92, %97 : vector<8x1xi32>
    %c-1_i32_33 = arith.constant -1 : i32
    %99 = vector.broadcast %c-1_i32_33 : i32 to vector<8x1xi32>
    %100 = arith.cmpi ne, %93, %99 : vector<8x1xi32>
    %101 = arith.andi %98, %100 : vector<8x1xi1>
    %c0_i32 = arith.constant 0 : i32
    %102 = vector.broadcast %c0_i32 : i32 to vector<8x1xi32>
    %103 = arith.cmpi sge, %95, %102 : vector<8x1xi32>
    %104 = arith.andi %101, %103 : vector<8x1xi1>
    %c8_i32 = arith.constant 8 : i32
    %105 = vector.broadcast %c8_i32 : i32 to vector<8x1xi32>
    %106 = arith.cmpi slt, %95, %105 : vector<8x1xi32>
    %107 = arith.andi %104, %106 : vector<8x1xi1>
    %c0_i32_34 = arith.constant 0 : i32
    %108 = vector.broadcast %c0_i32_34 : i32 to vector<8x1xi32>
    %109 = arith.cmpi sge, %96, %108 : vector<8x1xi32>
    %110 = arith.andi %107, %109 : vector<8x1xi1>
    %c8_i32_35 = arith.constant 8 : i32
    %111 = vector.broadcast %c8_i32_35 : i32 to vector<8x1xi32>
    %112 = arith.cmpi slt, %96, %111 : vector<8x1xi32>
    %113 = arith.andi %110, %112 : vector<8x1xi1>
    %114 = arith.extui %113 : vector<8x1xi1> to vector<8x1xi32>
    %115 = arith.sitofp %114 : vector<8x1xi32> to vector<8x1xf32>
    %116 = tpu.iota {dimensions = array<i32: 1>} : vector<8x8xi32>
    %117 = vector.broadcast %95 : vector<8x1xi32> to vector<8x8xi32>
    %118 = arith.cmpi eq, %116, %117 : vector<8x8xi32>
    %cst_36 = arith.constant 0.000000e+00 : f32
    %119 = vector.broadcast %cst_36 : f32 to vector<8x8xf32>
    %120 = arith.select %118, %90, %119 : vector<8x8xi1>, vector<8x8xf32>
    %cst_37 = arith.constant dense<0.000000e+00> : vector<8xf32>
    %121 = vector.multi_reduction <add>, %120, %cst_37 [1] : vector<8x8xf32> to vector<8xf32>
    %122 = vector.shape_cast %121 : vector<8xf32> to vector<8x1xf32>
    %123 = vector.broadcast %96 : vector<8x1xi32> to vector<8x8xi32>
    %124 = arith.cmpi eq, %116, %123 : vector<8x8xi32>
    %cst_38 = arith.constant 0.000000e+00 : f32
    %125 = vector.broadcast %cst_38 : f32 to vector<8x8xf32>
    %126 = arith.select %124, %90, %125 : vector<8x8xi1>, vector<8x8xf32>
    %cst_39 = arith.constant dense<0.000000e+00> : vector<8xf32>
    %127 = vector.multi_reduction <add>, %126, %cst_39 [1] : vector<8x8xf32> to vector<8xf32>
    %128 = vector.shape_cast %127 : vector<8xf32> to vector<8x1xf32>
    %cst_40 = arith.constant 1.000000e+00 : f32
    %129 = vector.broadcast %cst_40 : f32 to vector<8x1xf32>
    %130 = arith.addf %129, %128 : vector<8x1xf32>
    %131 = arith.subf %130, %122 : vector<8x1xf32>
    %cst_41 = arith.constant 0.000000e+00 : f32
    %132 = vector.broadcast %cst_41 : f32 to vector<8x1xf32>
    %133 = arith.maximumf %131, %132 : vector<8x1xf32>
    %134 = arith.mulf %115, %133 : vector<8x1xf32>
    %135 = vector.shape_cast %134 : vector<8x1xf32> to vector<1x8x1xf32>
    %cst_42 = arith.constant dense<0.000000e+00> : vector<1xf32>
    %136 = vector.multi_reduction <add>, %135, %cst_42 [1, 2] : vector<1x8x1xf32> to vector<1xf32>
    %137 = vector.shape_cast %136 : vector<1xf32> to vector<1x1x1xf32>
    %138 = vector.extract %137[0, 0, 0] : f32 from vector<1x1x1xf32>
    %139 = arith.mulf %115, %122 : vector<8x1xf32>
    %140 = arith.mulf %139, %122 : vector<8x1xf32>
    %141 = vector.shape_cast %140 : vector<8x1xf32> to vector<1x8x1xf32>
    %cst_43 = arith.constant dense<0.000000e+00> : vector<1xf32>
    %142 = vector.multi_reduction <add>, %141, %cst_43 [1, 2] : vector<1x8x1xf32> to vector<1xf32>
    %143 = vector.shape_cast %142 : vector<1xf32> to vector<1x1x1xf32>
    %144 = vector.extract %143[0, 0, 0] : f32 from vector<1x1x1xf32>
    %145 = arith.mulf %115, %128 : vector<8x1xf32>
    %146 = arith.mulf %145, %128 : vector<8x1xf32>
    %147 = vector.shape_cast %146 : vector<8x1xf32> to vector<1x8x1xf32>
    %cst_44 = arith.constant dense<0.000000e+00> : vector<1xf32>
    %148 = vector.multi_reduction <add>, %147, %cst_44 [1, 2] : vector<1x8x1xf32> to vector<1xf32>
    %149 = vector.shape_cast %148 : vector<1xf32> to vector<1x1x1xf32>
    %150 = vector.extract %149[0, 0, 0] : f32 from vector<1x1x1xf32>
    %151 = vector.shape_cast %115 : vector<8x1xf32> to vector<1x8x1xf32>
    %cst_45 = arith.constant dense<0.000000e+00> : vector<1xf32>
    %152 = vector.multi_reduction <add>, %151, %cst_45 [1, 2] : vector<1x8x1xf32> to vector<1xf32>
    %153 = vector.shape_cast %152 : vector<1xf32> to vector<1x1x1xf32>
    %154 = vector.extract %153[0, 0, 0] : f32 from vector<1x1x1xf32>
    %155 = vector.extract_strided_slice %90 {offsets = [0, 1], sizes = [8, 7], strides = [1, 1]} : vector<8x8xf32> to vector<8x7xf32>
    %156 = vector.extract_strided_slice %90 {offsets = [0, 0], sizes = [8, 7], strides = [1, 1]} : vector<8x8xf32> to vector<8x7xf32>
    %157 = arith.subf %155, %156 : vector<8x7xf32>
    %158 = arith.mulf %157, %157 : vector<8x7xf32>
    %159 = vector.shape_cast %158 : vector<8x7xf32> to vector<1x8x7xf32>
    %cst_46 = arith.constant dense<0.000000e+00> : vector<1xf32>
    %160 = vector.multi_reduction <add>, %159, %cst_46 [1, 2] : vector<1x8x7xf32> to vector<1xf32>
    %161 = vector.shape_cast %160 : vector<1xf32> to vector<1x1x1xf32>
    %162 = vector.extract %161[0, 0, 0] : f32 from vector<1x1x1xf32>
    %163 = arith.negf %90 : vector<8x8xf32>
    %164 = math.exp %163 : vector<8x8xf32>
    %cst_47 = arith.constant 1.000000e+00 : f32
    %165 = vector.broadcast %cst_47 : f32 to vector<8x8xf32>
    %166 = arith.addf %165, %164 : vector<8x8xf32>
    %167 = arith.divf %165, %166 : vector<8x8xf32>
    %168 = vector.extract_strided_slice %167 {offsets = [0, 1], sizes = [8, 7], strides = [1, 1]} : vector<8x8xf32> to vector<8x7xf32>
    %169 = vector.extract_strided_slice %167 {offsets = [0, 0], sizes = [8, 7], strides = [1, 1]} : vector<8x8xf32> to vector<8x7xf32>
    %170 = arith.subf %168, %169 : vector<8x7xf32>
    %171 = arith.mulf %170, %170 : vector<8x7xf32>
    %172 = vector.shape_cast %171 : vector<8x7xf32> to vector<1x8x7xf32>
    %cst_48 = arith.constant dense<0.000000e+00> : vector<1xf32>
    %173 = vector.multi_reduction <add>, %172, %cst_48 [1, 2] : vector<1x8x7xf32> to vector<1xf32>
    %174 = vector.shape_cast %173 : vector<1xf32> to vector<1x1x1xf32>
    %175 = vector.extract %174[0, 0, 0] : f32 from vector<1x1x1xf32>
    %176 = tpu.iota {dimensions = array<i32: 0>} : vector<8x128xi32>
    %177 = tpu.iota {dimensions = array<i32: 1>} : vector<8x128xi32>
    %c0_i32_49 = arith.constant 0 : i32
    %178 = vector.broadcast %c0_i32_49 : i32 to vector<8x128xi32>
    %179 = arith.cmpi eq, %176, %178 : vector<8x128xi32>
    %cst_50 = arith.constant 0.000000e+00 : f32
    %180 = vector.broadcast %cst_50 : f32 to vector<8x128xf32>
    %c0_i32_51 = arith.constant 0 : i32
    %181 = vector.broadcast %c0_i32_51 : i32 to vector<8x128xi32>
    %182 = arith.cmpi eq, %177, %181 : vector<8x128xi32>
    %183 = arith.andi %179, %182 : vector<8x128xi1>
    %cst_52 = arith.constant 0.000000e+00 : f32
    %184 = vector.broadcast %25 : f32 to vector<8x128xf32>
    %185 = vector.broadcast %cst_52 : f32 to vector<8x128xf32>
    %186 = arith.select %183, %184, %185 : vector<8x128xi1>, vector<8x128xf32>
    %187 = arith.addf %180, %186 : vector<8x128xf32>
    %c1_i32 = arith.constant 1 : i32
    %188 = vector.broadcast %c1_i32 : i32 to vector<8x128xi32>
    %189 = arith.cmpi eq, %177, %188 : vector<8x128xi32>
    %190 = arith.andi %179, %189 : vector<8x128xi1>
    %cst_53 = arith.constant 0.000000e+00 : f32
    %191 = vector.broadcast %51 : f32 to vector<8x128xf32>
    %192 = vector.broadcast %cst_53 : f32 to vector<8x128xf32>
    %193 = arith.select %190, %191, %192 : vector<8x128xi1>, vector<8x128xf32>
    %194 = arith.addf %187, %193 : vector<8x128xf32>
    %c2_i32 = arith.constant 2 : i32
    %195 = vector.broadcast %c2_i32 : i32 to vector<8x128xi32>
    %196 = arith.cmpi eq, %177, %195 : vector<8x128xi32>
    %197 = arith.andi %179, %196 : vector<8x128xi1>
    %cst_54 = arith.constant 0.000000e+00 : f32
    %198 = vector.broadcast %77 : f32 to vector<8x128xf32>
    %199 = vector.broadcast %cst_54 : f32 to vector<8x128xf32>
    %200 = arith.select %197, %198, %199 : vector<8x128xi1>, vector<8x128xf32>
    %201 = arith.addf %194, %200 : vector<8x128xf32>
    %c3_i32 = arith.constant 3 : i32
    %202 = vector.broadcast %c3_i32 : i32 to vector<8x128xi32>
    %203 = arith.cmpi eq, %177, %202 : vector<8x128xi32>
    %204 = arith.andi %179, %203 : vector<8x128xi1>
    %cst_55 = arith.constant 0.000000e+00 : f32
    %205 = vector.broadcast %89 : f32 to vector<8x128xf32>
    %206 = vector.broadcast %cst_55 : f32 to vector<8x128xf32>
    %207 = arith.select %204, %205, %206 : vector<8x128xi1>, vector<8x128xf32>
    %208 = arith.addf %201, %207 : vector<8x128xf32>
    %c4_i32 = arith.constant 4 : i32
    %209 = vector.broadcast %c4_i32 : i32 to vector<8x128xi32>
    %210 = arith.cmpi eq, %177, %209 : vector<8x128xi32>
    %211 = arith.andi %179, %210 : vector<8x128xi1>
    %cst_56 = arith.constant 0.000000e+00 : f32
    %212 = vector.broadcast %138 : f32 to vector<8x128xf32>
    %213 = vector.broadcast %cst_56 : f32 to vector<8x128xf32>
    %214 = arith.select %211, %212, %213 : vector<8x128xi1>, vector<8x128xf32>
    %215 = arith.addf %208, %214 : vector<8x128xf32>
    %c5_i32 = arith.constant 5 : i32
    %216 = vector.broadcast %c5_i32 : i32 to vector<8x128xi32>
    %217 = arith.cmpi eq, %177, %216 : vector<8x128xi32>
    %218 = arith.andi %179, %217 : vector<8x128xi1>
    %cst_57 = arith.constant 0.000000e+00 : f32
    %219 = vector.broadcast %144 : f32 to vector<8x128xf32>
    %220 = vector.broadcast %cst_57 : f32 to vector<8x128xf32>
    %221 = arith.select %218, %219, %220 : vector<8x128xi1>, vector<8x128xf32>
    %222 = arith.addf %215, %221 : vector<8x128xf32>
    %c6_i32 = arith.constant 6 : i32
    %223 = vector.broadcast %c6_i32 : i32 to vector<8x128xi32>
    %224 = arith.cmpi eq, %177, %223 : vector<8x128xi32>
    %225 = arith.andi %179, %224 : vector<8x128xi1>
    %cst_58 = arith.constant 0.000000e+00 : f32
    %226 = vector.broadcast %150 : f32 to vector<8x128xf32>
    %227 = vector.broadcast %cst_58 : f32 to vector<8x128xf32>
    %228 = arith.select %225, %226, %227 : vector<8x128xi1>, vector<8x128xf32>
    %229 = arith.addf %222, %228 : vector<8x128xf32>
    %c7_i32 = arith.constant 7 : i32
    %230 = vector.broadcast %c7_i32 : i32 to vector<8x128xi32>
    %231 = arith.cmpi eq, %177, %230 : vector<8x128xi32>
    %232 = arith.andi %179, %231 : vector<8x128xi1>
    %cst_59 = arith.constant 0.000000e+00 : f32
    %233 = vector.broadcast %154 : f32 to vector<8x128xf32>
    %234 = vector.broadcast %cst_59 : f32 to vector<8x128xf32>
    %235 = arith.select %232, %233, %234 : vector<8x128xi1>, vector<8x128xf32>
    %236 = arith.addf %229, %235 : vector<8x128xf32>
    %c8_i32_60 = arith.constant 8 : i32
    %237 = vector.broadcast %c8_i32_60 : i32 to vector<8x128xi32>
    %238 = arith.cmpi eq, %177, %237 : vector<8x128xi32>
    %239 = arith.andi %179, %238 : vector<8x128xi1>
    %cst_61 = arith.constant 0.000000e+00 : f32
    %240 = vector.broadcast %162 : f32 to vector<8x128xf32>
    %241 = vector.broadcast %cst_61 : f32 to vector<8x128xf32>
    %242 = arith.select %239, %240, %241 : vector<8x128xi1>, vector<8x128xf32>
    %243 = arith.addf %236, %242 : vector<8x128xf32>
    %c9_i32 = arith.constant 9 : i32
    %244 = vector.broadcast %c9_i32 : i32 to vector<8x128xi32>
    %245 = arith.cmpi eq, %177, %244 : vector<8x128xi32>
    %246 = arith.andi %179, %245 : vector<8x128xi1>
    %cst_62 = arith.constant 0.000000e+00 : f32
    %247 = vector.broadcast %175 : f32 to vector<8x128xf32>
    %248 = vector.broadcast %cst_62 : f32 to vector<8x128xf32>
    %249 = arith.select %246, %247, %248 : vector<8x128xi1>, vector<8x128xf32>
    %250 = arith.addf %243, %249 : vector<8x128xf32>
    %c0_63 = arith.constant 0 : index
    %c0_64 = arith.constant 0 : index
    %251 = vector.load %arg7[%c0_63, %c0_64] : memref<8x128xf32, #tpu.memory_space<vmem>>, vector<8x128xf32>
    tpu.vector_store %arg7[%c0_63, %c0_64], %250 {strides = array<i32>} : memref<8x128xf32, #tpu.memory_space<vmem>>, vector<8x128xf32>,
    return
  }
  func.func @transform_0(%arg0: i32) -> (i32, i32, i32) {
    %c0_i32 = arith.constant 0 : i32
    %c0_i32_0 = arith.constant 0 : i32
    %c0_i32_1 = arith.constant 0 : i32
    return %c0_i32, %arg0, %c0_i32_0 : i32, i32, i32
  }
  func.func @transform_1(%arg0: i32) -> (i32, i32) {
    %c0_i32 = arith.constant 0 : i32
    %c0_i32_0 = arith.constant 0 : i32
    return %arg0, %c0_i32 : i32, i32
  }
  func.func @transform_2(%arg0: i32) -> (i32, i32) {
    %c0_i32 = arith.constant 0 : i32
    %c0_i32_0 = arith.constant 0 : i32
    return %arg0, %c0_i32 : i32, i32
  }
  func.func @transform_3(%arg0: i32) -> (i32, i32) {
    %c0_i32 = arith.constant 0 : i32
    %c0_i32_0 = arith.constant 0 : i32
    return %arg0, %c0_i32 : i32, i32
  }
  func.func @transform_4(%arg0: i32) -> (i32, i32) {
    %c0_i32 = arith.constant 0 : i32
    %c0_i32_0 = arith.constant 0 : i32
    return %arg0, %c0_i32 : i32, i32
  }
  func.func @transform_5(%arg0: i32) -> (i32, i32) {
    %c0_i32 = arith.constant 0 : i32
    %c0_i32_0 = arith.constant 0 : i32
    return %arg0, %c0_i32 : i32, i32
  }
  func.func @transform_6(%arg0: i32) -> (i32, i32) {
    %c0_i32 = arith.constant 0 : i32
    %c0_i32_0 = arith.constant 0 : i32
    return %arg0, %c0_i32 : i32, i32
  }
}

</mosaic_0001>

<llo_original>
// kernel: tpu_custom_call.1
$region0: #{tpu_custom_call.1}
  #allocation0 [shape = 'u32[]', space=smem, size = 0x4, offset = 0x4, fixed_abs, tag = 'smem constant byte address 0x4 - core index']
  #allocation1 [shape = 'u32[144,128]{1,0:T(1,128)}', space=vmem, size = 0x12000, scoped, tag = 'internal scratch']
  %s0 = inlined_call_operand.hbm [shape: f32[3,8,8], index: 0, kind: input, shape index: {}]
  %s1 = inlined_call_operand.vmem [shape: f32[8,8], index: 1, kind: input, shape index: {}]
  %s2 = inlined_call_operand.vmem [shape: f32[8,8], index: 2, kind: input, shape index: {}]
  %s3 = inlined_call_operand.hbm [shape: f32[8,8], index: 3, kind: input, shape index: {}]
  %s4 = inlined_call_operand.vmem [shape: f32[8,8], index: 4, kind: input, shape index: {}]
  %s5 = inlined_call_operand.vmem [shape: s32[8,3], index: 5, kind: input, shape index: {}]
  %s6 = inlined_call_operand.hbm [shape: f32[8,128], index: 6, kind: output, shape index: {}]
  %s7 = sld [smem:[#allocation0]]
  $region42: #{tpu_custom_call.1} parent=0
    _
  %s9 = ssub.s32 1, %s7
  %s10 = scalar_select 0, %s9, %s7
  $region1: #{tpu_custom_call.1} parent=0
    #allocation2 [shape = 'u8[12288]{0}', space=vmem, size = 0x3000, scoped, tag = 'input window, operand 0, single buffered']
    #allocation3 [shape = 's32[1]{0}', space=sflag, size = 0x4, scoped, tag = 'scoped memory for tpu_custom_call.1']
    #allocation4 [shape = 's32[1]{0}', space=sflag, size = 0x4, scoped, tag = 'scoped memory for tpu_custom_call.1']
    #allocation5 [shape = 'u8[4096]{0}', space=vmem, size = 0x1000, scoped, tag = 'input window, operand 3, single buffered']
    #allocation6 [shape = 's32[1]{0}', space=sflag, size = 0x4, scoped, tag = 'scoped memory for tpu_custom_call.1']
    #allocation7 [shape = 'u8[4096]{0}', space=vmem, size = 0x1000, scoped, tag = 'output window, operand 0, single buffered']
    %11 = vsyncpa [#allocation3], 0
    %12 = vsyncpa [#allocation6], 0
    %13 = vsyncpa [#allocation4], 0
    // Predicated region
    $region2: #{tpu_custom_call.1} parent=1 // pred_check
      _
    $region3: #{tpu_custom_call.1} parent=1 // pred_check_branch
      %15 = sbr.rel (0) target = $region5
    $region4: #{tpu_custom_call.1} parent=1 // pred_region
      %s17 = ssub.s32 384, 384
      %18 = vsyncadd [#allocation3], %s17
      %s19 = sshll.u32 [#allocation2], 4
      %s20 = int_to_ptr.vmem [resolvable:$true] %s19
      %25 = dma.hbm_to_vmem [thread:$0]  %s0, 384, %s20, [#allocation3], 128, 128, 8
    $region5: #{tpu_custom_call.1} parent=1 // pred_fallthru
      _
    // Predicated region
    $region6: #{tpu_custom_call.1} parent=1 // pred_check
      _
    $region7: #{tpu_custom_call.1} parent=1 // pred_check_branch
      %27 = sbr.rel (0) target = $region9
    $region8: #{tpu_custom_call.1} parent=1 // pred_region
      _
    $region9: #{tpu_custom_call.1} parent=1 // pred_fallthru
      _
    // Predicated region
    $region10: #{tpu_custom_call.1} parent=1 // pred_check
      _
    $region11: #{tpu_custom_call.1} parent=1 // pred_check_branch
      %29 = sbr.rel (0) target = $region13
    $region12: #{tpu_custom_call.1} parent=1 // pred_region
      _
    $region13: #{tpu_custom_call.1} parent=1 // pred_fallthru
      _
    // Predicated region
    $region14: #{tpu_custom_call.1} parent=1 // pred_check
      _
    $region15: #{tpu_custom_call.1} parent=1 // pred_check_branch
      %31 = sbr.rel (0) target = $region17
    $region16: #{tpu_custom_call.1} parent=1 // pred_region
      %s33 = ssub.s32 128, 128
      %34 = vsyncadd [#allocation6], %s33
      %s36 = sshll.u32 [#allocation5], 4
      %s37 = int_to_ptr.vmem [resolvable:$true] %s36
      %39 = dma.hbm_to_vmem [thread:$0]  %s3, 128, %s37, [#allocation6]
    $region17: #{tpu_custom_call.1} parent=1 // pred_fallthru
      _
    // Predicated region
    $region18: #{tpu_custom_call.1} parent=1 // pred_check
      _
    $region19: #{tpu_custom_call.1} parent=1 // pred_check_branch
      %41 = sbr.rel (0) target = $region21
    $region20: #{tpu_custom_call.1} parent=1 // pred_region
      _
    $region21: #{tpu_custom_call.1} parent=1 // pred_fallthru
      _
    // Predicated region
    $region22: #{tpu_custom_call.1} parent=1 // pred_check
      _
    $region23: #{tpu_custom_call.1} parent=1 // pred_check_branch
      %43 = sbr.rel (0) target = $region25
    $region24: #{tpu_custom_call.1} parent=1 // pred_region
      _
    $region25: #{tpu_custom_call.1} parent=1 // pred_fallthru
      _
    // Predicated region
    $region26: #{tpu_custom_call.1} parent=1 // pred_check
      _
    $region27: #{tpu_custom_call.1} parent=1 // pred_check_branch
      %45 = sbr.rel (0) target = $region29
    $region28: #{tpu_custom_call.1} parent=1 // pred_region
      %46 = dma.done [#allocation3], 384
    $region29: #{tpu_custom_call.1} parent=1 // pred_fallthru
      _
    // Predicated region
    $region30: #{tpu_custom_call.1} parent=1 // pred_check
      _
    $region31: #{tpu_custom_call.1} parent=1 // pred_check_branch
      %48 = sbr.rel (0) target = $region33
    $region32: #{tpu_custom_call.1} parent=1 // pred_region
      %49 = dma.done [#allocation6], 128
    $region33: #{tpu_custom_call.1} parent=1 // pred_fallthru
      _
    %v50 = vld [vmem:[%s1] sm:$0xff]
    %v51 = vld [vmem:[#allocation2] sm:$0xff]
    %v52 = vxor.u32 %v51, 2147483648
    %v53 = vmul.f32 %v52, 1.442695
    %v54 = vpow.pop %v53
    %v55 = vadd.f32 %v54, 1.0
    %v56 = vrcp.pop %v55
    %v57 = vmul.f32 1.0, %v56
    %v58 = vsub.f32 0.0, %v57
    %v59 = vmul.f32 %v58, 1.442695
    %v60 = vpow.pop %v59
    %v61 = vsub.f32 1.0, %v50
    %v62 = vmul.f32 %v57, %v61
    %v63 = vadd.f32 %v60, 1.0
    %v64 = vlog2.pop %v63
    %v65 = vmul.f32 %v64, 0.6931472
    %v66 = vmul.f32 -0.5, %v60
    %v67 = vadd.f32 %v66, 1.0
    %v68 = vmul.f32 %v67, %v60
    %v69 = vand.u32 2147483647, %v60
    %vm70 = vcmp.lt.f32.partialorder %v69, 0.0004427343
    %v71 = vsel %vm70, %v68, %v65
    %v72 = vadd.f32 %v62, %v71
    %v73 = vmul.f32 %v50, %v61
    %v74 = vmul.f32 %v73, %v73
    %v75 = vmul.f32 %v74, %v73
    %v76 = vmul.f32 %v72, %v75
    %vm77 = vcmask 64512
    %v78 = vsel %vm77, %v76, 0.0
    %79 = vadd.xlane.f32.xlu0 %v78
    %v80 = vpop.xlane.xlu0 %79
    %v81 = vrot.slane %v80, 4
    %v82 = vadd.f32 %v80, %v81
    %v83 = vrot.slane %v82, 2
    %v84 = vadd.f32 %v82, %v83
    %v85 = vrot.slane %v84, 1
    %v86 = vadd.f32 %v84, %v85
    %s87 = vtos %v86
    %v88 = vld [vmem:[%s2] sm:$0xff]
    %s89 = scalar_lea.vmem [#allocation2], 8
    %v90 = vld [vmem:[%s89] sm:$0xff]
    %v91 = vxor.u32 %v90, 2147483648
    %v92 = vmul.f32 %v91, 1.442695
    %v93 = vpow.pop %v92
    %v94 = vadd.f32 %v93, 1.0
    %v95 = vrcp.pop %v94
    %v96 = vmul.f32 1.0, %v95
    %v97 = vsub.f32 0.0, %v96
    %v98 = vmul.f32 %v97, 1.442695
    %v99 = vpow.pop %v98
    %v100 = vsub.f32 1.0, %v88
    %v101 = vmul.f32 %v96, %v100
    %v102 = vadd.f32 %v99, 1.0
    %v103 = vlog2.pop %v102
    %v104 = vmul.f32 %v103, 0.6931472
    %v105 = vmul.f32 -0.5, %v99
    %v106 = vadd.f32 %v105, 1.0
    %v107 = vmul.f32 %v106, %v99
    %v108 = vand.u32 2147483647, %v99
    %vm109 = vcmp.lt.f32.partialorder %v108, 0.0004427343
    %v110 = vsel %vm109, %v107, %v104
    %v111 = vadd.f32 %v101, %v110
    %v112 = vmul.f32 %v88, %v100
    %v113 = vmul.f32 %v112, %v112
    %v114 = vmul.f32 %v113, %v112
    %v115 = vmul.f32 %v111, %v114
    %v116 = vsel %vm77, %v115, 0.0
    %117 = vadd.xlane.f32.xlu0 %v116
    %v118 = vpop.xlane.xlu0 %117
    %v119 = vrot.slane %v118, 4
    %v120 = vadd.f32 %v118, %v119
    %v121 = vrot.slane %v120, 2
    %v122 = vadd.f32 %v120, %v121
    %v123 = vrot.slane %v122, 1
    %v124 = vadd.f32 %v122, %v123
    %s125 = vtos %v124
    %v126 = vld [vmem:[#allocation5] sm:$0xff]
    %s127 = scalar_lea.vmem [#allocation2], 16
    %v128 = vld [vmem:[%s127] sm:$0xff]
    %v129 = vxor.u32 %v128, 2147483648
    %v130 = vmul.f32 %v129, 1.442695
    %v131 = vpow.pop %v130
    %v132 = vadd.f32 %v131, 1.0
    %v133 = vrcp.pop %v132
    %v134 = vmul.f32 1.0, %v133
    %v135 = vsub.f32 0.0, %v134
    %v136 = vmul.f32 %v135, 1.442695
    %v137 = vpow.pop %v136
    %v138 = vsub.f32 1.0, %v126
    %v139 = vmul.f32 %v134, %v138
    %v140 = vadd.f32 %v137, 1.0
    %v141 = vlog2.pop %v140
    %v142 = vmul.f32 %v141, 0.6931472
    %v143 = vmul.f32 -0.5, %v137
    %v144 = vadd.f32 %v143, 1.0
    %v145 = vmul.f32 %v144, %v137
    %v146 = vand.u32 2147483647, %v137
    %vm147 = vcmp.lt.f32.partialorder %v146, 0.0004427343
    %v148 = vsel %vm147, %v145, %v142
    %v149 = vadd.f32 %v139, %v148
    %v150 = vmul.f32 %v126, %v138
    %v151 = vmul.f32 %v150, %v150
    %v152 = vmul.f32 %v151, %v150
    %v153 = vmul.f32 %v149, %v152
    %v154 = vsel %vm77, %v153, 0.0
    %155 = vadd.xlane.f32.xlu0 %v154
    %v156 = vpop.xlane.xlu0 %155
    %v157 = vrot.slane %v156, 4
    %v158 = vadd.f32 %v156, %v157
    %v159 = vrot.slane %v158, 2
    %v160 = vadd.f32 %v158, %v159
    %v161 = vrot.slane %v160, 1
    %v162 = vadd.f32 %v160, %v161
    %s163 = vtos %v162
    %v164 = vadd.f32 %v137, 1.0
    %v165 = vrcp.pop %v164
    %v166 = vmul.f32 1.0, %v165
    %168 = vrot.lane.b32.xlu0 %v166, 1
    %v169 = vpop.permute.xlu0 %168
    %v171 = vsub.f32 %v166, %v169
    %v172 = vmul.f32 %v171, %v171
    %174 = vrot.lane.b32.xlu0 %v172, 127
    %v175 = vpop.permute.xlu0 %174
    %vm177 = vcmask 56320
    %v178 = vsel %vm177, %v175, 0.0
    %179 = vadd.xlane.f32.xlu0 %v178
    %v180 = vpop.xlane.xlu0 %179
    %v181 = vrot.slane %v180, 4
    %v182 = vadd.f32 %v180, %v181
    %v183 = vrot.slane %v182, 2
    %v184 = vadd.f32 %v182, %v183
    %v185 = vrot.slane %v184, 1
    %v186 = vadd.f32 %v184, %v185
    %s187 = vtos %v186
    %v188 = vld [vmem:[%s4] sm:$0xff]
    %v189 = vld [vmem:[%s5] sm:$0xff]
    %190 = vrot.lane.b32.xlu0 %v189, 126
    %v191 = vpop.permute.xlu0 %190
    %v192 = vsub.s32 %v189, %v191
    %193 = vrot.lane.b32.xlu0 %v189, 127
    %v194 = vpop.permute.xlu0 %193
    %v195 = vsub.s32 %v189, %v194
    %vm196 = vcmp.ne.s32.totalorder %v189, 4294967295
    %v197 = vsel %vm196, 1, 0
    %198 = vrot.lane.b32.xlu0 %v197, 127
    %v199 = vpop.permute.xlu0 %198
    %vm200 = vcmp.ne.s32.totalorder %v199, 0
    %vm201 = vmand %vm196, %vm200
    %vm202 = vcmp.ge.s32.totalorder %v192, 0
    %vm203 = vmand %vm201, %vm202
    %vm204 = vcmp.lt.s32.totalorder %v192, 8
    %vm205 = vmand %vm203, %vm204
    %vm206 = vcmp.ge.s32.totalorder %v195, 0
    %v207 = vsel %vm206, 1, 0
    %208 = vrot.lane.b32.xlu0 %v207, 127
    %v209 = vpop.permute.xlu0 %208
    %vm210 = vcmp.ne.s32.totalorder %v209, 0
    %vm211 = vmand %vm205, %vm210
    %vm212 = vcmp.lt.s32.totalorder %v195, 8
    %v213 = vsel %vm212, 1, 0
    %214 = vrot.lane.b32.xlu0 %v213, 127
    %v215 = vpop.permute.xlu0 %214
    %vm216 = vcmp.ne.s32.totalorder %v215, 0
    %vm217 = vmand %vm211, %vm216
    %v218 = vsel %vm217, 1, 0
    %v219 = vcvt.s32.f32 %v218
    %v220 = vlaneseq
    %v221 = vand.u32 %v220, 127
    %222 = vset.pattern.permute.xlu0 0
    %223 = vperm.xlu0 %222, %v192
    %v224 = vpop.permute.xlu0 %223
    %vm225 = vcmp.eq.s32.totalorder %v221, %v224
    %v226 = vsel %vm225, %v188, 0.0
    %v227 = vsel %vm77, %v226, 0.0
    %228 = vadd.xlane.f32.xlu0 %v227
    %v229 = vpop.xlane.xlu0 %228
    %230 = vset.pattern.permute.xlu0 1
    %231 = vperm.xlu0 %230, %v195
    %v232 = vpop.permute.xlu0 %231
    %vm233 = vcmp.eq.s32.totalorder %v221, %v232
    %v234 = vsel %vm233, %v188, 0.0
    %v235 = vsel %vm77, %v234, 0.0
    %236 = vadd.xlane.f32.xlu0 %v235
    %v237 = vpop.xlane.xlu0 %236
    %v238 = vadd.f32 %v237, 1.0
    %v239 = vsub.f32 %v238, %v229
    %v240 = vmax.f32 %v239, 0.0
    %v241 = vmul.f32 %v219, %v240
    %vm242 = vcmask 7168
    %v243 = vsel %vm242, %v241, 0.0
    %244 = vadd.xlane.f32.xlu0 %v243
    %v245 = vpop.xlane.xlu0 %244
    %v246 = vrot.slane %v245, 4
    %v247 = vadd.f32 %v245, %v246
    %v248 = vrot.slane %v247, 2
    %v249 = vadd.f32 %v247, %v248
    %v250 = vrot.slane %v249, 1
    %v251 = vadd.f32 %v249, %v250
    %s252 = vtos %v251
    %v253 = vmul.f32 %v219, %v229
    %v254 = vmul.f32 %v253, %v229
    %v255 = vsel %vm242, %v254, 0.0
    %256 = vadd.xlane.f32.xlu0 %v255
    %v257 = vpop.xlane.xlu0 %256
    %v258 = vrot.slane %v257, 4
    %v259 = vadd.f32 %v257, %v258
    %v260 = vrot.slane %v259, 2
    %v261 = vadd.f32 %v259, %v260
    %v262 = vrot.slane %v261, 1
    %v263 = vadd.f32 %v261, %v262
    %s264 = vtos %v263
    %v265 = vmul.f32 %v219, %v237
    %v266 = vmul.f32 %v265, %v237
    %v267 = vsel %vm242, %v266, 0.0
    %268 = vadd.xlane.f32.xlu0 %v267
    %v269 = vpop.xlane.xlu0 %268
    %v270 = vrot.slane %v269, 4
    %v271 = vadd.f32 %v269, %v270
    %v272 = vrot.slane %v271, 2
    %v273 = vadd.f32 %v271, %v272
    %v274 = vrot.slane %v273, 1
    %v275 = vadd.f32 %v273, %v274
    %s276 = vtos %v275
    %v277 = vsel %vm242, %v219, 0.0
    %278 = vadd.xlane.f32.xlu0 %v277
    %v279 = vpop.xlane.xlu0 %278
    %v280 = vrot.slane %v279, 4
    %v281 = vadd.f32 %v279, %v280
    %v282 = vrot.slane %v281, 2
    %v283 = vadd.f32 %v281, %v282
    %v284 = vrot.slane %v283, 1
    %v285 = vadd.f32 %v283, %v284
    %s286 = vtos %v285
    %288 = vrot.lane.b32.xlu0 %v188, 1
    %v289 = vpop.permute.xlu0 %288
    %v291 = vsub.f32 %v188, %v289
    %v292 = vmul.f32 %v291, %v291
    %294 = vrot.lane.b32.xlu0 %v292, 127
    %v295 = vpop.permute.xlu0 %294
    %v297 = vsel %vm177, %v295, 0.0
    %298 = vadd.xlane.f32.xlu0 %v297
    %v299 = vpop.xlane.xlu0 %298
    %v300 = vrot.slane %v299, 4
    %v301 = vadd.f32 %v299, %v300
    %v302 = vrot.slane %v301, 2
    %v303 = vadd.f32 %v301, %v302
    %v304 = vrot.slane %v303, 1
    %v305 = vadd.f32 %v303, %v304
    %s306 = vtos %v305
    %v307 = vxor.u32 %v188, 2147483648
    %v308 = vmul.f32 %v307, 1.442695
    %v309 = vpow.pop %v308
    %v310 = vadd.f32 %v309, 1.0
    %v311 = vrcp.pop %v310
    %v312 = vmul.f32 1.0, %v311
    %314 = vrot.lane.b32.xlu0 %v312, 1
    %v315 = vpop.permute.xlu0 %314
    %v317 = vsub.f32 %v312, %v315
    %v318 = vmul.f32 %v317, %v317
    %320 = vrot.lane.b32.xlu0 %v318, 127
    %v321 = vpop.permute.xlu0 %320
    %v323 = vsel %vm177, %v321, 0.0
    %324 = vadd.xlane.f32.xlu0 %v323
    %v325 = vpop.xlane.xlu0 %324
    %v326 = vrot.slane %v325, 4
    %v327 = vadd.f32 %v325, %v326
    %v328 = vrot.slane %v327, 2
    %v329 = vadd.f32 %v327, %v328
    %v330 = vrot.slane %v329, 1
    %v331 = vadd.f32 %v329, %v330
    %s332 = vtos %v331
    %v333 = vlaneseq
    %v334 = vshrl.u32 %v333, 7
    %vm335 = vcmp.eq.s32.totalorder %v334, 0
    %vm336 = vcmp.eq.s32.totalorder %v221, 0
    %vm337 = vmand %vm335, %vm336
    %v338 = vstv %s87
    %v339 = vsel %vm337, %v338, 0.0
    %v340 = vadd.f32 %v339, 0.0
    %vm341 = vcmp.eq.s32.totalorder %v221, 1
    %vm342 = vmand %vm335, %vm341
    %v343 = vstv %s125
    %v344 = vsel %vm342, %v343, 0.0
    %v345 = vadd.f32 %v340, %v344
    %vm346 = vcmp.eq.s32.totalorder %v221, 2
    %vm347 = vmand %vm335, %vm346
    %v348 = vstv %s163
    %v349 = vsel %vm347, %v348, 0.0
    %v350 = vadd.f32 %v345, %v349
    %vm351 = vcmp.eq.s32.totalorder %v221, 3
    %vm352 = vmand %vm335, %vm351
    %v353 = vstv %s187
    %v354 = vsel %vm352, %v353, 0.0
    %v355 = vadd.f32 %v350, %v354
    %vm356 = vcmp.eq.s32.totalorder %v221, 4
    %vm357 = vmand %vm335, %vm356
    %v358 = vstv %s252
    %v359 = vsel %vm357, %v358, 0.0
    %v360 = vadd.f32 %v355, %v359
    %vm361 = vcmp.eq.s32.totalorder %v221, 5
    %vm362 = vmand %vm335, %vm361
    %v363 = vstv %s264
    %v364 = vsel %vm362, %v363, 0.0
    %v365 = vadd.f32 %v360, %v364
    %vm366 = vcmp.eq.s32.totalorder %v221, 6
    %vm367 = vmand %vm335, %vm366
    %v368 = vstv %s276
    %v369 = vsel %vm367, %v368, 0.0
    %v370 = vadd.f32 %v365, %v369
    %vm371 = vcmp.eq.s32.totalorder %v221, 7
    %vm372 = vmand %vm335, %vm371
    %v373 = vstv %s286
    %v374 = vsel %vm372, %v373, 0.0
    %v375 = vadd.f32 %v370, %v374
    %vm376 = vcmp.eq.s32.totalorder %v221, 8
    %vm377 = vmand %vm335, %vm376
    %v378 = vstv %s306
    %v379 = vsel %vm377, %v378, 0.0
    %v380 = vadd.f32 %v375, %v379
    %vm381 = vcmp.eq.s32.totalorder %v221, 9
    %vm382 = vmand %vm335, %vm381
    %v383 = vstv %s332
    %v384 = vsel %vm382, %v383, 0.0
    %v385 = vadd.f32 %v380, %v384
    %386 = vst [vmem:[#allocation7] sm:$0xff] %v385
    // Predicated region
    $region34: #{tpu_custom_call.1} parent=1 // pred_check
      _
    $region35: #{tpu_custom_call.1} parent=1 // pred_check_branch
      %388 = sbr.rel (0) target = $region37
    $region36: #{tpu_custom_call.1} parent=1 // pred_region
      %s390 = ssub.s32 128, 128
      %391 = vsyncadd [#allocation4], %s390
      %s393 = sshll.u32 [#allocation7], 4
      %s394 = int_to_ptr.vmem [resolvable:$true] %s393
      %396 = dma.vmem_to_hbm [thread:$0]  %s394, 128, %s6, [#allocation4]
    $region37: #{tpu_custom_call.1} parent=1 // pred_fallthru
      _
    // Predicated region
    $region38: #{tpu_custom_call.1} parent=1 // pred_check
      _
    $region39: #{tpu_custom_call.1} parent=1 // pred_check_branch
      %398 = sbr.rel (0) target = $region41
    $region40: #{tpu_custom_call.1} parent=1 // pred_region
      %399 = dma.done [#allocation4], 128
    $region41: #{tpu_custom_call.1} parent=1 // pred_fallthru
      _
    %400 = vsyncpa [#allocation3], 1
    %401 = vsyncpa [#allocation6], 1
    %402 = vsyncpa [#allocation4], 1

</llo_original>
